<compile_context>
chip_gen: v6e
topology: v6e:2x2x1
jax: 0.10.0
libtpu: 0.0.40
codegen_flags: <defaults>
</compile_context>

<pallas_src>
import math

import jax
import jax.numpy as jnp
from jax import lax
from jax.experimental import pallas as pl
from jax.experimental.pallas import tpu as pltpu


def _round_up(x, m):
    return ((x + m - 1) // m) * m


def _pick_block_batch(B, SK, block_batch=None, target_rows=256):
    """Rows per grid step R = TB*SK.  TB divides B (no batch padding) and is
    capped at B//2 so the grid has >= 2 steps (both v7x TensorCores busy)."""
    if block_batch is not None:
        tb = max(1, min(B, block_batch))
        while B % tb:           # still prefer a divisor -> no batch padding
            tb -= 1
        return tb
    tb_target = max(1, target_rows // max(SK, 1))
    if B >= 2:
        tb_target = min(tb_target, max(1, B // 2))
    tb_target = min(tb_target, B)
    for tb in range(tb_target, 0, -1):
        if B % tb == 0:
            return tb
    return 1


def make_predictor_constants(params, num_discretization_levels, num_seqs,
                             seq_len, batch, *, block_batch=None,
                             target_rows=256):
    """Grid-invariant operands.  Build ONCE at init and reuse across calls."""
    del num_discretization_levels  # not needed for the invariants
    S, K = num_seqs, seq_len
    N, D = params["class_present_embed"].shape
    SK = S * K
    Dp = _round_up(D, 128)
    scale = float(D) ** 0.5
    TB = _pick_block_batch(batch, SK, block_batch, target_rows)

    pad_d = ((0, 0), (0, Dp - D))
    # Fused, pre-scaled embedding table: [present | value | query], lane-aligned.
    tab = jnp.concatenate([
        jnp.pad(params["class_present_embed"].astype(jnp.float32) * scale, pad_d),
        jnp.pad(params["class_value_embed"].astype(jnp.float32) * scale, pad_d),
        jnp.pad(params["class_query_embed"].astype(jnp.float32) * scale, pad_d),
    ], axis=1)                                                     # (N, 3*Dp)
    # Pre-scaled position embedding tiled over the num_seqs axis.
    pos = jnp.tile(params["position_embed"].astype(jnp.float32) * scale,
                   (S, 1))                                         # (SK, D)
    # Block-diagonal inclusive-cumsum mask over R = TB*SK rows: lower-triangular
    # within each length-K sequence, zero across sequences and batch rows.
    r = jnp.arange(SK, dtype=jnp.int32)
    same_seq = (r[:, None] // K) == (r[None, :] // K)
    incl_sk = jnp.where(same_seq & (r[None, :] <= r[:, None]),
                        1.0, 0.0).astype(jnp.float32)              # (SK, SK)
    incl = jnp.kron(jnp.eye(TB, dtype=jnp.float32), incl_sk)       # (R, R)

    return dict(tab=tab, pos=pos, incl=incl, TB=TB, Dp=Dp, scale=scale)


def _make_kernel(TB, SK, N, D, Dp, inv, precision):
    R = TB * SK

    def kernel(cls_ref, val_ref, base_ref, tab_ref, pos_ref, incl_ref,
               cpred_ref, vpred_ref):
        # ---- fused one-hot gather of the pre-scaled [present|value|query] table
        cls = cls_ref[...].reshape(R, 1)                          # (R,1) int32
        iota_n = lax.broadcasted_iota(jnp.int32, (R, N), 1)
        onehot = (cls == iota_n).astype(jnp.float32)              # (R,N)
        emb = jnp.dot(onehot, tab_ref[...],
                      preferred_element_type=jnp.float32,
                      precision=precision)                        # (R,3*Dp)

        # ---- x = [cpe | cve * sel] via a lane-masked multiplier (no concat)
        sel = val_ref[...].reshape(R, 1).astype(jnp.float32) * inv
        sel = sel * sel
        lane = lax.broadcasted_iota(jnp.int32, (R, 2 * Dp), 1)
        x = emb[:, :2 * Dp] * jnp.where(lane < Dp, 1.0, sel)      # (R,2*Dp)

        # ---- inclusive cumsum of cpe + exclusive cumsum of cve in ONE 2-D
        #      block-diagonal matmul; exclusive = incl @ x - x.
        cum = jnp.dot(incl_ref[...], x,
                      preferred_element_type=jnp.float32,
                      precision=precision)                        # (R,2*Dp)

        common = cum[:, :Dp] + (cum[:, Dp:] - x[:, Dp:])          # (R,Dp)
        # Reshape back to (TB,SK,*) for the base/pos broadcast adds; this is a
        # free (view) reshape whenever SK % 8 == 0.
        cpred = (common - emb[:, :Dp]).reshape(TB, SK, Dp)
        vpred = (common + emb[:, 2 * Dp:]).reshape(TB, SK, Dp)
        if Dp != D:            # drop lane padding -> no HBM write amplification
            cpred = cpred[..., :D]
            vpred = vpred[..., :D]

        add = base_ref[...] + pos_ref[...]        # (TB,1,D)+(SK,D) -> (TB,SK,D)
        cpred_ref[...] = cpred + add
        vpred_ref[...] = vpred + add

    return kernel


def predictor_input_params_forward(class_indexes, value_indexes, base_predictor,
                                    params, num_discretization_levels, *,
                                    constants=None, block_batch=None,
                                    target_rows=256, precision=None):
    """class_indexes, value_indexes: int (B, S, K); base_predictor: f32 (B, D).
    Returns (class_predictor, value_predictor), each f32 (B, S, K, D)."""
    B, S, K = class_indexes.shape
    N, D = params["class_present_embed"].shape
    SK = S * K
    inv = 1.0 / (num_discretization_levels - 1)

    if constants is None:
        constants = make_predictor_constants(
            params, num_discretization_levels, S, K, B,
            block_batch=block_batch, target_rows=target_rows)
    TB, Dp = constants["TB"], constants["Dp"]
    assert B % TB == 0, "block batch must divide the batch"
    nb = B // TB
    R = TB * SK

    cls = class_indexes.reshape(B, SK, 1).astype(jnp.int32)
    val = value_indexes.reshape(B, SK, 1).astype(jnp.int32)
    base = base_predictor.astype(jnp.float32).reshape(B, 1, D)

    kernel = _make_kernel(TB, SK, N, D, Dp, inv, precision)

    # Explicit VMEM budget: pipelined I/O is double-buffered by default; add
    # room for the in-kernel intermediates (onehot, emb, x, cum, results).
    io_bytes = 4 * (2 * TB * SK + TB * D + N * 3 * Dp + SK * D + R * R
                    + 2 * TB * SK * D)
    tmp_bytes = 4 * (2 * R * N + R * 3 * Dp + 2 * R * 2 * Dp + R * Dp
                     + 3 * TB * SK * Dp)
    vmem_limit = int(min(max(2 * io_bytes + tmp_bytes, 32 * 1024 * 1024),
                         48 * 1024 * 1024))

    grid_spec = pltpu.PrefetchScalarGridSpec(
        num_scalar_prefetch=0,
        grid=(nb,),
        in_specs=[
            pl.BlockSpec((TB, SK, 1), lambda b: (b, 0, 0)),   # class indexes
            pl.BlockSpec((TB, SK, 1), lambda b: (b, 0, 0)),   # value indexes
            pl.BlockSpec((TB, 1, D), lambda b: (b, 0, 0)),    # base predictor
            pl.BlockSpec((N, 3 * Dp), lambda b: (0, 0)),      # fused table (invariant)
            pl.BlockSpec((SK, D), lambda b: (0, 0)),          # position embed (invariant)
            pl.BlockSpec((R, R), lambda b: (0, 0)),           # cumsum mask (invariant)
        ],
        out_specs=[
            pl.BlockSpec((TB, SK, D), lambda b: (b, 0, 0)),
            pl.BlockSpec((TB, SK, D), lambda b: (b, 0, 0)),
        ],
    )

    cpred, vpred = pl.pallas_call(
        kernel,
        grid_spec=grid_spec,
        out_shape=(
            jax.ShapeDtypeStruct((B, SK, D), jnp.float32),
            jax.ShapeDtypeStruct((B, SK, D), jnp.float32),
        ),
        compiler_params=pltpu.CompilerParams(
            dimension_semantics=("parallel",),
            vmem_limit_bytes=vmem_limit),
    )(cls, val, base, constants["tab"], constants["pos"], constants["incl"])

    return cpred.reshape(B, S, K, D), vpred.reshape(B, S, K, D)


def reference_forward(class_indexes, value_indexes, base_predictor, params,
                      num_discretization_levels):
    """Pure-JAX reference mirroring the PyTorch module."""
    D = params["class_present_embed"].shape[1]
    scale = float(D) ** 0.5
    cpe = params["class_present_embed"][class_indexes]          # (B,S,K,D)
    cpe_cum = jnp.cumsum(cpe, axis=-2)
    sel = (value_indexes.astype(jnp.float32)
           * (1.0 / (num_discretization_levels - 1))) ** 2
    cve = params["class_value_embed"][class_indexes] * sel[..., None]
    cve_excum = jnp.cumsum(cve, axis=-2) - cve
    cqe = params["class_query_embed"][class_indexes]
    common = cve_excum + cpe_cum + params["position_embed"]
    base = base_predictor[:, None, None, :]
    return (base + scale * (common - cpe), base + scale * (common + cqe))


if __name__ == "__main__":
    # Small shapes consistent with the module.
    B = 2                # flattened leading "*" batch dims
    S = 4                # num_seqs
    K = 8                # seq_len
    N = 16               # num_classes
    D = 32               # predictor_dim
    M = 8                # num_discretization_levels

    key = jax.random.PRNGKey(0)
    k1, k2, k3, k4, k5, k6, k7 = jax.random.split(key, 7)
    embed_scale = math.sqrt(D)
    params = {
        "class_present_embed": jax.random.normal(k1, (N, D), jnp.float32) / embed_scale,
        "class_value_embed":   jax.random.normal(k2, (N, D), jnp.float32) / embed_scale,
        "class_query_embed":   jax.random.normal(k3, (N, D), jnp.float32) / embed_scale,
        "position_embed":      jax.random.normal(k4, (K, D), jnp.float32) / embed_scale,
    }

    class_indexes = jax.random.randint(k5, (B, S, K), 0, N, dtype=jnp.int32)
    value_indexes = jax.random.randint(k6, (B, S, K), 0, M, dtype=jnp.int32)
    base_predictor = jax.random.normal(k7, (B, D), jnp.float32)

    # Build the grid-invariant operands once (hoisted out of the per-call path).
    constants = make_predictor_constants(params, M, S, K, B)

    cpred, vpred = predictor_input_params_forward(
        class_indexes, value_indexes, base_predictor, params, M,
        constants=constants)
    jax.block_until_ready((cpred, vpred))

    cref, vref = reference_forward(
        class_indexes, value_indexes, base_predictor, params, M)
    assert cpred.shape == (B, S, K, D) and vpred.shape == (B, S, K, D)
    assert jnp.allclose(cpred, cref, atol=1e-4, rtol=1e-4)
    assert jnp.allclose(vpred, vref, atol=1e-4, rtol=1e-4)

    print("KERNEL_OK")
</pallas_src>

<mosaic_0001>
module attributes {stable_mosaic.version = 11 : i64} {
  func.func @kernel(%arg0: i32, %arg1: memref<1x32x1xi32, #tpu.memory_space<vmem>>, %arg2: memref<1x32x1xi32, #tpu.memory_space<vmem>>, %arg3: memref<1x1x32xf32, #tpu.memory_space<vmem>>, %arg4: memref<16x384xf32, #tpu.memory_space<vmem>>, %arg5: memref<32x32xf32, #tpu.memory_space<vmem>>, %arg6: memref<32x32xf32, #tpu.memory_space<vmem>>, %arg7: memref<1x32x32xf32, #tpu.memory_space<vmem>>, %arg8: memref<1x32x32xf32, #tpu.memory_space<vmem>>) attributes {dimension_semantics = [#tpu.dimension_semantics<parallel>], iteration_bounds = array<i64: 2>, scalar_prefetch = 0 : i64, scratch_operands = 0 : i64, tpu.core_type = #tpu.core_type<tc>, window_params = [{transform_indices = @transform_0, window_bounds = array<i64: 1, 32, 1>}, {transform_indices = @transform_1, window_bounds = array<i64: 1, 32, 1>}, {transform_indices = @transform_2, window_bounds = array<i64: 1, 1, 32>}, {pipeline_mode = #tpu.pipeline_mode<synchronous>, transform_indices = @transform_3, window_bounds = array<i64: 16, 384>}, {pipeline_mode = #tpu.pipeline_mode<synchronous>, transform_indices = @transform_4, window_bounds = array<i64: 32, 32>}, {pipeline_mode = #tpu.pipeline_mode<synchronous>, transform_indices = @transform_5, window_bounds = array<i64: 32, 32>}, {transform_indices = @transform_6, window_bounds = array<i64: 1, 32, 32>}, {transform_indices = @transform_7, window_bounds = array<i64: 1, 32, 32>}]} {
    %c0 = arith.constant 0 : index
    %c0_0 = arith.constant 0 : index
    %c0_1 = arith.constant 0 : index
    %0 = vector.load %arg1[%c0, %c0_0, %c0_1] : memref<1x32x1xi32, #tpu.memory_space<vmem>>, vector<1x32x1xi32>
    %1 = vector.shape_cast %0 : vector<1x32x1xi32> to vector<32x1xi32>
    %2 = tpu.iota {dimensions = array<i32: 1>} : vector<32x16xi32>
    %3 = vector.broadcast %1 : vector<32x1xi32> to vector<32x16xi32>
    %4 = arith.cmpi eq, %3, %2 : vector<32x16xi32>
    %5 = arith.extui %4 : vector<32x16xi1> to vector<32x16xi32>
    %6 = arith.sitofp %5 : vector<32x16xi32> to vector<32x16xf32>
    %c0_2 = arith.constant 0 : index
    %c0_3 = arith.constant 0 : index
    %7 = vector.load %arg4[%c0_2, %c0_3] : memref<16x384xf32, #tpu.memory_space<vmem>>, vector<16x384xf32>
    %cst = arith.constant dense<0.000000e+00> : vector<32x384xf32>
    %8 = tpu.matmul %6, %7, %cst {dimension_numbers = #tpu.dot_dimension_numbers<[1], [0], [0], [1], [0, 0, 1, 1], [], []>} : vector<32x16xf32>, vector<16x384xf32>, vector<32x384xf32> -> vector<32x384xf32>
    %c0_4 = arith.constant 0 : index
    %c0_5 = arith.constant 0 : index
    %c0_6 = arith.constant 0 : index
    %9 = vector.load %arg2[%c0_4, %c0_5, %c0_6] : memref<1x32x1xi32, #tpu.memory_space<vmem>>, vector<1x32x1xi32>
    %10 = vector.shape_cast %9 : vector<1x32x1xi32> to vector<32x1xi32>
    %11 = arith.sitofp %10 : vector<32x1xi32> to vector<32x1xf32>
    %cst_7 = arith.constant 0.142857149 : f32
    %12 = vector.broadcast %cst_7 : f32 to vector<32x1xf32>
    %13 = arith.mulf %11, %12 : vector<32x1xf32>
    %14 = arith.mulf %13, %13 : vector<32x1xf32>
    %15 = tpu.iota {dimensions = array<i32: 1>} : vector<32x256xi32>
    %16 = vector.extract_strided_slice %8 {offsets = [0, 0], sizes = [32, 256], strides = [1, 1]} : vector<32x384xf32> to vector<32x256xf32>
    %c128_i32 = arith.constant 128 : i32
    %17 = vector.broadcast %c128_i32 : i32 to vector<32x256xi32>
    %18 = arith.cmpi slt, %15, %17 : vector<32x256xi32>
    %cst_8 = arith.constant 1.000000e+00 : f32
    %19 = vector.broadcast %cst_8 : f32 to vector<32x256xf32>
    %20 = vector.shape_cast %14 : vector<32x1xf32> to vector<32x1xf32>
    %21 = vector.broadcast %20 : vector<32x1xf32> to vector<32x256xf32>
    %22 = arith.select %18, %19, %21 : vector<32x256xi1>, vector<32x256xf32>
    %23 = arith.mulf %16, %22 : vector<32x256xf32>
    %c0_9 = arith.constant 0 : index
    %c0_10 = arith.constant 0 : index
    %24 = vector.load %arg6[%c0_9, %c0_10] : memref<32x32xf32, #tpu.memory_space<vmem>>, vector<32x32xf32>
    %cst_11 = arith.constant dense<0.000000e+00> : vector<32x256xf32>
    %25 = tpu.matmul %24, %23, %cst_11 {dimension_numbers = #tpu.dot_dimension_numbers<[1], [0], [0], [1], [0, 0, 1, 1], [], []>} : vector<32x32xf32>, vector<32x256xf32>, vector<32x256xf32> -> vector<32x256xf32>
    %26 = vector.extract_strided_slice %25 {offsets = [0, 0], sizes = [32, 128], strides = [1, 1]} : vector<32x256xf32> to vector<32x128xf32>
    %27 = vector.extract_strided_slice %25 {offsets = [0, 128], sizes = [32, 128], strides = [1, 1]} : vector<32x256xf32> to vector<32x128xf32>
    %28 = vector.extract_strided_slice %23 {offsets = [0, 128], sizes = [32, 128], strides = [1, 1]} : vector<32x256xf32> to vector<32x128xf32>
    %29 = arith.subf %27, %28 : vector<32x128xf32>
    %30 = arith.addf %26, %29 : vector<32x128xf32>
    %31 = vector.extract_strided_slice %8 {offsets = [0, 0], sizes = [32, 128], strides = [1, 1]} : vector<32x384xf32> to vector<32x128xf32>
    %32 = arith.subf %30, %31 : vector<32x128xf32>
    %33 = vector.shape_cast %32 : vector<32x128xf32> to vector<1x32x128xf32>
    %34 = vector.extract_strided_slice %8 {offsets = [0, 256], sizes = [32, 128], strides = [1, 1]} : vector<32x384xf32> to vector<32x128xf32>
    %35 = arith.addf %30, %34 : vector<32x128xf32>
    %36 = vector.shape_cast %35 : vector<32x128xf32> to vector<1x32x128xf32>
    %37 = vector.extract_strided_slice %33 {offsets = [0, 0, 0], sizes = [1, 32, 32], strides = [1, 1, 1]} : vector<1x32x128xf32> to vector<1x32x32xf32>
    %38 = vector.extract_strided_slice %36 {offsets = [0, 0, 0], sizes = [1, 32, 32], strides = [1, 1, 1]} : vector<1x32x128xf32> to vector<1x32x32xf32>
    %c0_12 = arith.constant 0 : index
    %c0_13 = arith.constant 0 : index
    %c0_14 = arith.constant 0 : index
    %39 = vector.load %arg3[%c0_12, %c0_13, %c0_14] : memref<1x1x32xf32, #tpu.memory_space<vmem>>, vector<1x1x32xf32>
    %c0_15 = arith.constant 0 : index
    %c0_16 = arith.constant 0 : index
    %40 = vector.load %arg5[%c0_15, %c0_16] : memref<32x32xf32, #tpu.memory_space<vmem>>, vector<32x32xf32>
    %41 = vector.shape_cast %40 : vector<32x32xf32> to vector<1x32x32xf32>
    %42 = vector.broadcast %39 : vector<1x1x32xf32> to vector<1x32x32xf32>
    %43 = arith.addf %42, %41 : vector<1x32x32xf32>
    %44 = arith.addf %37, %43 : vector<1x32x32xf32>
    %c0_17 = arith.constant 0 : index
    %c0_18 = arith.constant 0 : index
    %c0_19 = arith.constant 0 : index
    %45 = vector.load %arg7[%c0_17, %c0_18, %c0_19] : memref<1x32x32xf32, #tpu.memory_space<vmem>>, vector<1x32x32xf32>
    tpu.vector_store %arg7[%c0_17, %c0_18, %c0_19], %44 {strides = array<i32>} : memref<1x32x32xf32, #tpu.memory_space<vmem>>, vector<1x32x32xf32>,
    %46 = arith.addf %38, %43 : vector<1x32x32xf32>
    %c0_20 = arith.constant 0 : index
    %c0_21 = arith.constant 0 : index
    %c0_22 = arith.constant 0 : index
    %47 = vector.load %arg8[%c0_20, %c0_21, %c0_22] : memref<1x32x32xf32, #tpu.memory_space<vmem>>, vector<1x32x32xf32>
    tpu.vector_store %arg8[%c0_20, %c0_21, %c0_22], %46 {strides = array<i32>} : memref<1x32x32xf32, #tpu.memory_space<vmem>>, vector<1x32x32xf32>,
    return
  }
  func.func @transform_0(%arg0: i32) -> (i32, i32, i32) {
    %c0_i32 = arith.constant 0 : i32
    %c0_i32_0 = arith.constant 0 : i32
    %c0_i32_1 = arith.constant 0 : i32
    return %arg0, %c0_i32, %c0_i32_0 : i32, i32, i32
  }
  func.func @transform_1(%arg0: i32) -> (i32, i32, i32) {
    %c0_i32 = arith.constant 0 : i32
    %c0_i32_0 = arith.constant 0 : i32
    %c0_i32_1 = arith.constant 0 : i32
    return %arg0, %c0_i32, %c0_i32_0 : i32, i32, i32
  }
  func.func @transform_2(%arg0: i32) -> (i32, i32, i32) {
    %c0_i32 = arith.constant 0 : i32
    %c0_i32_0 = arith.constant 0 : i32
    %c0_i32_1 = arith.constant 0 : i32
    return %arg0, %c0_i32, %c0_i32_0 : i32, i32, i32
  }
  func.func @transform_3(%arg0: i32) -> (i32, i32) {
    %c0_i32 = arith.constant 0 : i32
    %c0_i32_0 = arith.constant 0 : i32
    %c0_i32_1 = arith.constant 0 : i32
    return %c0_i32, %c0_i32_0 : i32, i32
  }
  func.func @transform_4(%arg0: i32) -> (i32, i32) {
    %c0_i32 = arith.constant 0 : i32
    %c0_i32_0 = arith.constant 0 : i32
    %c0_i32_1 = arith.constant 0 : i32
    return %c0_i32, %c0_i32_0 : i32, i32
  }
  func.func @transform_5(%arg0: i32) -> (i32, i32) {
    %c0_i32 = arith.constant 0 : i32
    %c0_i32_0 = arith.constant 0 : i32
    %c0_i32_1 = arith.constant 0 : i32
    return %c0_i32, %c0_i32_0 : i32, i32
  }
  func.func @transform_6(%arg0: i32) -> (i32, i32, i32) {
    %c0_i32 = arith.constant 0 : i32
    %c0_i32_0 = arith.constant 0 : i32
    %c0_i32_1 = arith.constant 0 : i32
    return %arg0, %c0_i32, %c0_i32_0 : i32, i32, i32
  }
  func.func @transform_7(%arg0: i32) -> (i32, i32, i32) {
    %c0_i32 = arith.constant 0 : i32
    %c0_i32_0 = arith.constant 0 : i32
    %c0_i32_1 = arith.constant 0 : i32
    return %arg0, %c0_i32, %c0_i32_0 : i32, i32, i32
  }
}

</mosaic_0001>

<llo_original>
// kernel: tpu_custom_call.1
$region0: #{tpu_custom_call.1}
  #allocation0 [shape = 'u32[]', space=smem, size = 0x4, offset = 0x4, fixed_abs, tag = 'smem constant byte address 0x4 - core index']
  #allocation1 [shape = 'u32[144,128]{1,0:T(1,128)}', space=vmem, size = 0x12000, scoped, tag = 'internal scratch']
  %s0 = inlined_call_operand.vmem [shape: s32[2,32,1], index: 0, kind: input, shape index: {}]
  %s1 = inlined_call_operand.vmem [shape: s32[2,32,1], index: 1, kind: input, shape index: {}]
  %s2 = inlined_call_operand.vmem [shape: f32[2,1,32], index: 2, kind: input, shape index: {}]
  %s3 = inlined_call_operand.vmem [shape: f32[16,384], index: 3, kind: input, shape index: {}]
  %s4 = inlined_call_operand.vmem [shape: f32[32,32], index: 4, kind: input, shape index: {}]
  %s5 = inlined_call_operand.vmem [shape: f32[32,32], index: 5, kind: input, shape index: {}]
  %s6 = inlined_call_operand.hbm [shape: f32[2,32,32], index: 6, kind: output, shape index: {0}]
  %s7 = inlined_call_operand.hbm [shape: f32[2,32,32], index: 7, kind: output, shape index: {1}]
  %8 = xla_tuple %s6, %s7
  %s9 = sld [smem:[#allocation0]]
  $region65: #{tpu_custom_call.1} parent=0
    _
  %s11 = ssub.s32 1, %s9
  %s12 = scalar_select 0, %s11, %s9
  $region1: #{tpu_custom_call.1} parent=0
    #allocation2 [shape = 'u8[32768]{0}', space=vmem, size = 0x8000, scoped, tag = 'output window, operand 0']
    #allocation3 [shape = 's32[2]{0}', space=sflag, size = 0x8, scoped, tag = 'scoped memory for tpu_custom_call.1']
    #allocation4 [shape = 'u8[32768]{0}', space=vmem, size = 0x8000, scoped, tag = 'output window, operand 1']
    #allocation5 [shape = 's32[2]{0}', space=sflag, size = 0x8, scoped, tag = 'scoped memory for tpu_custom_call.1']
    %13 = vsyncpa [#allocation3], 0
    %s14 = scalar_lea.sflag [#allocation3], 1
    %15 = vsyncpa %s14, 0
    %16 = vsyncpa [#allocation5], 0
    %s17 = scalar_lea.sflag [#allocation5], 1
    %18 = vsyncpa %s17, 0
    loop: start=0, step=1, limit=4
    $region2: #{tpu_custom_call.1} parent=1 // loop_pre_header
      _
    $region3: #{tpu_custom_call.1} parent=1 // loop_header
      %s20 = sphi 0, %s24
      %p21 = scmp.ge.s32.totalorder %s20, 4
      %s30 = sphi 0, %s32
      %s33 = sphi 0, %s30
      %s34 = sphi 0, %s33
      %s50 = sphi 0, %s34
      %s56 = sphi 0, %s58
      %s59 = sphi 0, %s56
      %s60 = sphi 0, %s59
      %s76 = sphi 0, %s60
      %s82 = sphi 0, %s84
      %s85 = sphi 0, %s82
      %s86 = sphi 0, %s85
      %s102 = sphi 0, %s86
      %s106 = sphi 0, %s106
      %s108 = sphi 0, %s106
      %s109 = sphi 0, %s108
      %s123 = sphi 0, %s109
      %s127 = sphi 0, %s127
      %s129 = sphi 0, %s127
      %s130 = sphi 0, %s129
      %s144 = sphi 0, %s130
      %s148 = sphi 0, %s148
      %s150 = sphi 0, %s148
      %s151 = sphi 0, %s150
      %s165 = sphi 0, %s151
      %s171 = sphi 0, %s173
      %s174 = sphi 0, %s171
      %s175 = sphi 0, %s174
      %s191 = sphi 0, %s175
      %s197 = sphi 0, %s199
      %s200 = sphi 0, %s197
      %s201 = sphi 0, %s200
      %s217 = sphi 0, %s201
    $region4: #{tpu_custom_call.1} parent=1 // loop_header_branch
      %23 = sbr.rel (%p21) target = $region8
    $region5: #{tpu_custom_call.1} parent=1 // loop_body
      %s25 = ssub.s32 %s20, 1
      %s26 = ssub.s32 %s20, 2
      %s27 = sadd.s32 %s20, 1
      %s28 = ssub.s32 %s20, %s27
      %p29 = scmp.eq.s32.totalorder %s28, 0
      %s31 = sadd.s32 %s30, 1
      %s32 = scalar_select %p29, %s30, %s31
      %p35 = pneg %p29
      %p36 = scmp.eq.s32.totalorder %s20, 1
      %p37 = por %p35, %p36
      %p38 = scmp.ne.s32.totalorder %s30, %s33
      %p39 = scmp.eq.s32.totalorder %s20, 0
      %p40 = por %p38, %p39
      %p41 = scmp.ne.s32.totalorder %s30, %s33
      %p42 = scmp.eq.s32.totalorder %s25, 1
      %p43 = por %p41, %p42
      %p44 = scmp.ne.s32.totalorder %s33, %s34
      %p45 = scmp.eq.s32.totalorder %s25, 0
      %p46 = por %p44, %p45
      %p47 = scmp.ne.s32.totalorder %s33, %s34
      %p48 = scmp.eq.s32.totalorder %s26, 1
      %p49 = por %p47, %p48
      %p51 = scmp.ne.s32.totalorder %s34, %s50
      %p52 = scmp.eq.s32.totalorder %s26, 0
      %p53 = por %p51, %p52
      %s54 = ssub.s32 %s20, %s27
      %p55 = scmp.eq.s32.totalorder %s54, 0
      %s57 = sadd.s32 %s56, 1
      %s58 = scalar_select %p55, %s56, %s57
      %p61 = pneg %p55
      %p62 = scmp.eq.s32.totalorder %s20, 1
      %p63 = por %p61, %p62
      %p64 = scmp.ne.s32.totalorder %s56, %s59
      %p65 = scmp.eq.s32.totalorder %s20, 0
      %p66 = por %p64, %p65
      %p67 = scmp.ne.s32.totalorder %s56, %s59
      %p68 = scmp.eq.s32.totalorder %s25, 1
      %p69 = por %p67, %p68
      %p70 = scmp.ne.s32.totalorder %s59, %s60
      %p71 = scmp.eq.s32.totalorder %s25, 0
      %p72 = por %p70, %p71
      %p73 = scmp.ne.s32.totalorder %s59, %s60
      %p74 = scmp.eq.s32.totalorder %s26, 1
      %p75 = por %p73, %p74
      %p77 = scmp.ne.s32.totalorder %s60, %s76
      %p78 = scmp.eq.s32.totalorder %s26, 0
      %p79 = por %p77, %p78
      %s80 = ssub.s32 %s20, %s27
      %p81 = scmp.eq.s32.totalorder %s80, 0
      %s83 = sadd.s32 %s82, 1
      %s84 = scalar_select %p81, %s82, %s83
      %p87 = pneg %p81
      %p88 = scmp.eq.s32.totalorder %s20, 1
      %p89 = por %p87, %p88
      %p90 = scmp.ne.s32.totalorder %s82, %s85
      %p91 = scmp.eq.s32.totalorder %s20, 0
      %p92 = por %p90, %p91
      %p93 = scmp.ne.s32.totalorder %s82, %s85
      %p94 = scmp.eq.s32.totalorder %s25, 1
      %p95 = por %p93, %p94
      %p96 = scmp.ne.s32.totalorder %s85, %s86
      %p97 = scmp.eq.s32.totalorder %s25, 0
      %p98 = por %p96, %p97
      %p99 = scmp.ne.s32.totalorder %s85, %s86
      %p100 = scmp.eq.s32.totalorder %s26, 1
      %p101 = por %p99, %p100
      %p103 = scmp.ne.s32.totalorder %s86, %s102
      %p104 = scmp.eq.s32.totalorder %s26, 0
      %p105 = por %p103, %p104
      %s107 = sadd.s32 %s106, 1
      %p110 = scmp.eq.s32.totalorder %s20, 1
      %p111 = scmp.ne.s32.totalorder %s106, %s108
      %p112 = scmp.eq.s32.totalorder %s20, 0
      %p113 = por %p111, %p112
      %p114 = scmp.ne.s32.totalorder %s106, %s108
      %p115 = scmp.eq.s32.totalorder %s25, 1
      %p116 = por %p114, %p115
      %p117 = scmp.ne.s32.totalorder %s108, %s109
      %p118 = scmp.eq.s32.totalorder %s25, 0
      %p119 = por %p117, %p118
      %p120 = scmp.ne.s32.totalorder %s108, %s109
      %p121 = scmp.eq.s32.totalorder %s26, 1
      %p122 = por %p120, %p121
      %p124 = scmp.ne.s32.totalorder %s109, %s123
      %p125 = scmp.eq.s32.totalorder %s26, 0
      %p126 = por %p124, %p125
      %s128 = sadd.s32 %s127, 1
      %p131 = scmp.eq.s32.totalorder %s20, 1
      %p132 = scmp.ne.s32.totalorder %s127, %s129
      %p133 = scmp.eq.s32.totalorder %s20, 0
      %p134 = por %p132, %p133
      %p135 = scmp.ne.s32.totalorder %s127, %s129
      %p136 = scmp.eq.s32.totalorder %s25, 1
      %p137 = por %p135, %p136
      %p138 = scmp.ne.s32.totalorder %s129, %s130
      %p139 = scmp.eq.s32.totalorder %s25, 0
      %p140 = por %p138, %p139
      %p141 = scmp.ne.s32.totalorder %s129, %s130
      %p142 = scmp.eq.s32.totalorder %s26, 1
      %p143 = por %p141, %p142
      %p145 = scmp.ne.s32.totalorder %s130, %s144
      %p146 = scmp.eq.s32.totalorder %s26, 0
      %p147 = por %p145, %p146
      %s149 = sadd.s32 %s148, 1
      %p152 = scmp.eq.s32.totalorder %s20, 1
      %p153 = scmp.ne.s32.totalorder %s148, %s150
      %p154 = scmp.eq.s32.totalorder %s20, 0
      %p155 = por %p153, %p154
      %p156 = scmp.ne.s32.totalorder %s148, %s150
      %p157 = scmp.eq.s32.totalorder %s25, 1
      %p158 = por %p156, %p157
      %p159 = scmp.ne.s32.totalorder %s150, %s151
      %p160 = scmp.eq.s32.totalorder %s25, 0
      %p161 = por %p159, %p160
      %p162 = scmp.ne.s32.totalorder %s150, %s151
      %p163 = scmp.eq.s32.totalorder %s26, 1
      %p164 = por %p162, %p163
      %p166 = scmp.ne.s32.totalorder %s151, %s165
      %p167 = scmp.eq.s32.totalorder %s26, 0
      %p168 = por %p166, %p167
      %s169 = ssub.s32 %s20, %s27
      %p170 = scmp.eq.s32.totalorder %s169, 0
      %s172 = sadd.s32 %s171, 1
      %s173 = scalar_select %p170, %s171, %s172
      %p176 = pneg %p170
      %p177 = scmp.eq.s32.totalorder %s20, 1
      %p178 = por %p176, %p177
      %p179 = scmp.ne.s32.totalorder %s171, %s174
      %p180 = scmp.eq.s32.totalorder %s20, 0
      %p181 = por %p179, %p180
      %p182 = scmp.ne.s32.totalorder %s171, %s174
      %p183 = scmp.eq.s32.totalorder %s25, 1
      %p184 = por %p182, %p183
      %p185 = scmp.ne.s32.totalorder %s174, %s175
      %p186 = scmp.eq.s32.totalorder %s25, 0
      %p187 = por %p185, %p186
      %p188 = scmp.ne.s32.totalorder %s174, %s175
      %p189 = scmp.eq.s32.totalorder %s26, 1
      %p190 = por %p188, %p189
      %p192 = scmp.ne.s32.totalorder %s175, %s191
      %p193 = scmp.eq.s32.totalorder %s26, 0
      %p194 = por %p192, %p193
      %s195 = ssub.s32 %s20, %s27
      %p196 = scmp.eq.s32.totalorder %s195, 0
      %s198 = sadd.s32 %s197, 1
      %s199 = scalar_select %p196, %s197, %s198
      %p202 = pneg %p196
      %p203 = scmp.eq.s32.totalorder %s20, 1
      %p204 = por %p202, %p203
      %p205 = scmp.ne.s32.totalorder %s197, %s200
      %p206 = scmp.eq.s32.totalorder %s20, 0
      %p207 = por %p205, %p206
      %p208 = scmp.ne.s32.totalorder %s197, %s200
      %p209 = scmp.eq.s32.totalorder %s25, 1
      %p210 = por %p208, %p209
      %p211 = scmp.ne.s32.totalorder %s200, %s201
      %p212 = scmp.eq.s32.totalorder %s25, 0
      %p213 = por %p211, %p212
      %p214 = scmp.ne.s32.totalorder %s200, %s201
      %p215 = scmp.eq.s32.totalorder %s26, 1
      %p216 = por %p214, %p215
      %p218 = scmp.ne.s32.totalorder %s201, %s217
      %p219 = scmp.eq.s32.totalorder %s26, 0
      %p220 = por %p218, %p219
      %p221 = scmp.le.s32.totalorder 1, %s20
      %p222 = scmp.lt.s32.totalorder %s20, 3
      %p223 = pnand %p221, %p222
      %p224 = pneg %p223
      // Predicated region
      $region9: #{tpu_custom_call.1} parent=5 // pred_check
        _
      $region10: #{tpu_custom_call.1} parent=5 // pred_check_branch
        %226 = sbr.rel (%p223) target = $region12
      $region11: #{tpu_custom_call.1} parent=5 // pred_region
        %s227 = ssub.s32 %s20, 1
        // Predicated region
        $region13: #{tpu_custom_call.1} parent=11 // pred_check
          %p228 = pneg %p119
        $region14: #{tpu_custom_call.1} parent=11 // pred_check_branch
          %230 = sbr.rel (%p228) target = $region16
        $region15: #{tpu_custom_call.1} parent=11 // pred_region
          _
        $region16: #{tpu_custom_call.1} parent=11 // pred_fallthru
          _
        // Predicated region
        $region17: #{tpu_custom_call.1} parent=11 // pred_check
          %p231 = pneg %p140
        $region18: #{tpu_custom_call.1} parent=11 // pred_check_branch
          %233 = sbr.rel (%p231) target = $region20
        $region19: #{tpu_custom_call.1} parent=11 // pred_region
          _
        $region20: #{tpu_custom_call.1} parent=11 // pred_fallthru
          _
        // Predicated region
        $region21: #{tpu_custom_call.1} parent=11 // pred_check
          %p234 = pneg %p161
        $region22: #{tpu_custom_call.1} parent=11 // pred_check_branch
          %236 = sbr.rel (%p234) target = $region24
        $region23: #{tpu_custom_call.1} parent=11 // pred_region
          _
        $region24: #{tpu_custom_call.1} parent=11 // pred_fallthru
          _
      $region12: #{tpu_custom_call.1} parent=5 // pred_fallthru
        _
      %p237 = scmp.lt.s32.totalorder %s20, 2
      // Predicated region
      $region25: #{tpu_custom_call.1} parent=5 // pred_check
        %p238 = pneg %p237
      $region26: #{tpu_custom_call.1} parent=5 // pred_check_branch
        %240 = sbr.rel (%p238) target = $region28
      $region27: #{tpu_custom_call.1} parent=5 // pred_region
        // Predicated region
        $region29: #{tpu_custom_call.1} parent=27 // pred_check
          %p241 = pneg %p40
        $region30: #{tpu_custom_call.1} parent=27 // pred_check_branch
          %243 = sbr.rel (%p241) target = $region32
        $region31: #{tpu_custom_call.1} parent=27 // pred_region
          %p244 = scmp.lt.s32.totalorder %s20, 1
          %s245 = scalar_select %p244, %s20, 1
          %s246 = smul.addr %s245, 4
          %s247 = smul.addr %s246, 8
          %s248 = scalar_lea.vmem %s0, %s247
        $region32: #{tpu_custom_call.1} parent=27 // pred_fallthru
          _
        // Predicated region
        $region33: #{tpu_custom_call.1} parent=27 // pred_check
          %p249 = pneg %p66
        $region34: #{tpu_custom_call.1} parent=27 // pred_check_branch
          %251 = sbr.rel (%p249) target = $region36
        $region35: #{tpu_custom_call.1} parent=27 // pred_region
          %p252 = scmp.lt.s32.totalorder %s20, 1
          %s253 = scalar_select %p252, %s20, 1
          %s254 = smul.addr %s253, 4
          %s255 = smul.addr %s254, 8
          %s256 = scalar_lea.vmem %s1, %s255
        $region36: #{tpu_custom_call.1} parent=27 // pred_fallthru
          _
        // Predicated region
        $region37: #{tpu_custom_call.1} parent=27 // pred_check
          %p257 = pneg %p92
        $region38: #{tpu_custom_call.1} parent=27 // pred_check_branch
          %259 = sbr.rel (%p257) target = $region40
        $region39: #{tpu_custom_call.1} parent=27 // pred_region
          %p260 = scmp.lt.s32.totalorder %s20, 1
          %s261 = scalar_select %p260, %s20, 1
          %s262 = scalar_lea.vmem %s2, %s261
        $region40: #{tpu_custom_call.1} parent=27 // pred_fallthru
          _
      $region28: #{tpu_custom_call.1} parent=5 // pred_fallthru
        _
      %p263 = scmp.le.s32.totalorder 1, %s20
      %p264 = scmp.lt.s32.totalorder %s20, 3
      %p265 = pnand %p263, %p264
      %p266 = pneg %p265
      // Predicated region
      $region41: #{tpu_custom_call.1} parent=5 // pred_check
        _
      $region42: #{tpu_custom_call.1} parent=5 // pred_check_branch
        %268 = sbr.rel (%p265) target = $region44
      $region43: #{tpu_custom_call.1} parent=5 // pred_region
        %s269 = ssub.s32 %s20, 1
        %p270 = scmp.lt.s32.totalorder %s25, 1
        %s271 = scalar_select %p270, %s25, 1
        %s272 = smul.addr %s271, 4
        %s273 = smul.addr %s272, 8
        %s274 = scalar_lea.vmem %s0, %s273
        %p275 = pneg %p46
        %p276 = pneg %p43
        %p277 = scmp.lt.s32.totalorder %s25, 1
        %s278 = scalar_select %p277, %s25, 1
        %s279 = smul.addr %s278, 4
        %s280 = smul.addr %s279, 8
        %s281 = scalar_lea.vmem %s1, %s280
        %p282 = pneg %p72
        %p283 = pneg %p69
        %p284 = scmp.lt.s32.totalorder %s25, 1
        %s285 = scalar_select %p284, %s25, 1
        %s286 = scalar_lea.vmem %s2, %s285
        %p287 = pneg %p98
        %p288 = pneg %p95
        %p289 = pneg %p119
        %p290 = pneg %p116
        %p291 = pneg %p140
        %p292 = pneg %p137
        %p293 = pneg %p161
        %p294 = pneg %p158
        %p295 = pneg %p187
        %p296 = pneg %p184
        %s297 = sand.u32 %s174, 1
        %s298 = scalar_lea.sflag [#allocation3], %s297
        %s299 = sand.u32 %s174, 1
        %s300 = smul.addr %s299, 32
        %s301 = scalar_lea.vmem [#allocation2], %s300
        %p302 = pneg %p213
        %p303 = pneg %p210
        %s304 = sand.u32 %s200, 1
        %s305 = scalar_lea.sflag [#allocation5], %s304
        %s306 = sand.u32 %s200, 1
        %s307 = smul.addr %s306, 32
        %s308 = scalar_lea.vmem [#allocation4], %s307
        %p309 = scmp.lt.s32.totalorder %s25, 1
        %s310 = scalar_select %p309, %s25, 1
        %s311 = smul.addr %s310, 4
        %s312 = smul.addr %s311, 8
        %s313 = scalar_lea.vmem %s0, %s312
        %p314 = scmp.lt.s32.totalorder %s25, 1
        %s315 = scalar_select %p314, %s25, 1
        %s316 = smul.addr %s315, 4
        %s317 = smul.addr %s316, 8
        %s318 = scalar_lea.vmem %s1, %s317
        %p319 = scmp.lt.s32.totalorder %s25, 1
        %s320 = scalar_select %p319, %s25, 1
        %s321 = scalar_lea.vmem %s2, %s320
        %v322 = vld [vmem:[%s313] sm:$0xff]
        %v323 = vld [vmem:[%s313 + $0x8] sm:$0xff]
        %v324 = vld [vmem:[%s313 + $0x10] sm:$0xff]
        %v325 = vld [vmem:[%s313 + $0x18] sm:$0xff]
        %v326 = vlaneseq
        %v327 = vand.u32 %v326, 127
        %328 = vset.pattern.permute.xlu0 0
        %329 = vperm.xlu0 %328, %v322
        %v330 = vpop.permute.xlu0 %329
        %331 = vset.pattern.permute.xlu0 0
        %332 = vperm.xlu0 %331, %v323
        %v333 = vpop.permute.xlu0 %332
        %334 = vset.pattern.permute.xlu0 0
        %335 = vperm.xlu0 %334, %v324
        %v336 = vpop.permute.xlu0 %335
        %337 = vset.pattern.permute.xlu0 0
        %338 = vperm.xlu0 %337, %v325
        %v339 = vpop.permute.xlu0 %338
        %vm340 = vcmp.eq.s32.totalorder %v330, %v327
        %vm341 = vcmp.eq.s32.totalorder %v333, %v327
        %vm342 = vcmp.eq.s32.totalorder %v336, %v327
        %vm343 = vcmp.eq.s32.totalorder %v339, %v327
        %v344 = vsel %vm340, 1, 0
        %v345 = vsel %vm341, 1, 0
        %v346 = vsel %vm342, 1, 0
        %v347 = vsel %vm343, 1, 0
        %v348 = vcvt.s32.f32 %v344
        %v349 = vcvt.s32.f32 %v345
        %v350 = vcvt.s32.f32 %v346
        %v351 = vcvt.s32.f32 %v347
        %v352 = vld [vmem:[%s3] sm:$0xff]
        %v353 = vld [vmem:[%s3 + $0x8] sm:$0xff]
        %v354 = vld [vmem:[%s3 + $0x10] sm:$0xff]
        %v355 = vld [vmem:[%s3 + $0x18] sm:$0xff]
        %v356 = vld [vmem:[%s3 + $0x20] sm:$0xff]
        %v357 = vld [vmem:[%s3 + $0x28] sm:$0xff]
        %vm358 = vcmask 130048
        %v360 = vsel %vm358, %v348, 0
        %v363 = vsel %vm358, %v349, 0
        %v366 = vsel %vm358, %v350, 0
        %v369 = vsel %vm358, %v351, 0
        %371 = vmatprep.subr.mxu0 0.0
        %372 = vmatpush1.msra.mxu0 0.0
        %373 = vmatprep.subr.mxu0 0.0
        %374 = vmatpush1.msra.mxu0 0.0
        %375 = vmatprep.subr.mxu0 0.0
        %376 = vmatpush1.msra.mxu0 0.0
        %377 = vmatprep.subr.mxu0 0.0
        %378 = vmatpush1.msra.mxu0 0.0
        %379 = vmatprep.subr.mxu0 0.0
        %380 = vmatpush1.msra.mxu0 0.0
        %381 = vmatprep.subr.mxu0 0.0
        %382 = vmatpush1.msra.mxu0 0.0
        %383 = vmatprep.subr.mxu0 0.0
        %384 = vmatpush1.msra.mxu0 0.0
        %385 = vmatprep.subr.mxu0 0.0
        %386 = vmatpush1.msra.mxu0 0.0
        %387 = vmatprep.subr.mxu0 0.0
        %388 = vmatpush1.msra.mxu0 0.0
        %389 = vmatprep.subr.mxu0 0.0
        %390 = vmatpush1.msra.mxu0 0.0
        %391 = vmatprep.subr.mxu0 0.0
        %392 = vmatpush1.msra.mxu0 0.0
        %393 = vmatprep.subr.mxu0 0.0
        %394 = vmatpush1.msra.mxu0 0.0
        %395 = vmatprep.subr.mxu0 0.0
        %396 = vmatpush1.msra.mxu0 0.0
        %397 = vmatprep.subr.mxu0 0.0
        %398 = vmatpush1.msra.mxu0 0.0
        %399 = vmatprep.subr.mxu0 %v356
        %400 = vmatpush1.msra.mxu0 %v355
        %401 = vmatprep.subr.mxu0 %v353
        %402 = vmatpush1.msra.mxu0 %v352
        %403 = vmatprep.subr.mxu0 0.0
        %404 = vmatpush2.msra.mxu0 0.0
        %405 = vmatprep.subr.mxu0 0.0
        %406 = vmatpush2.msra.mxu0 0.0
        %407 = vmatprep.subr.mxu0 0.0
        %408 = vmatpush2.msra.mxu0 0.0
        %409 = vmatprep.subr.mxu0 0.0
        %410 = vmatpush2.msra.mxu0 0.0
        %411 = vmatprep.subr.mxu0 0.0
        %412 = vmatpush2.msra.mxu0 0.0
        %413 = vmatprep.subr.mxu0 0.0
        %414 = vmatpush2.msra.mxu0 0.0
        %415 = vmatprep.subr.mxu0 0.0
        %416 = vmatpush2.msra.mxu0 0.0
        %417 = vmatprep.subr.mxu0 0.0
        %418 = vmatpush2.msra.mxu0 0.0
        %419 = vmatprep.subr.mxu0 0.0
        %420 = vmatpush2.msra.mxu0 0.0
        %421 = vmatprep.subr.mxu0 0.0
        %422 = vmatpush2.msra.mxu0 0.0
        %423 = vmatprep.subr.mxu0 0.0
        %424 = vmatpush2.msra.mxu0 0.0
        %425 = vmatprep.subr.mxu0 0.0
        %426 = vmatpush2.msra.mxu0 0.0
        %427 = vmatprep.subr.mxu0 0.0
        %428 = vmatpush2.msra.mxu0 0.0
        %429 = vmatprep.subr.mxu0 0.0
        %430 = vmatpush2.msra.mxu0 0.0
        %431 = vmatprep.subr.mxu0 0.0
        %432 = vmatpush2.msra.mxu0 0.0
        %433 = vmatprep.subr.mxu0 0.0
        %434 = vmatpush2.msra.mxu0 0.0
        %435 = vmatprep.mubr.f32.mxu0 0.0
        %436 = vmatmul.mubr.f32.gmra.mxu0 %v360
        %v437 = vpop.f32.mrf.mxu0
        %v438 = vadd.f32 0.0, %v437
        %v439 = vpop.f32.mrf.mxu0
        %v440 = vadd.f32 0.0, %v439
        %441 = vmatprep.mubr.f32.mxu0 0.0
        %442 = vmatmul.mubr.f32.gmra.mxu0 %v363
        %v443 = vpop.f32.mrf.mxu0
        %v444 = vadd.f32 0.0, %v443
        %v445 = vpop.f32.mrf.mxu0
        %v446 = vadd.f32 0.0, %v445
        %447 = vmatprep.mubr.f32.mxu0 0.0
        %448 = vmatmul.mubr.f32.gmra.mxu0 %v366
        %v449 = vpop.f32.mrf.mxu0
        %v450 = vadd.f32 0.0, %v449
        %v451 = vpop.f32.mrf.mxu0
        %v452 = vadd.f32 0.0, %v451
        %453 = vmatprep.mubr.f32.mxu0 0.0
        %454 = vmatmul.mubr.f32.gmra.mxu0 %v369
        %v455 = vpop.f32.mrf.mxu0
        %v456 = vadd.f32 0.0, %v455
        %v457 = vpop.f32.mrf.mxu0
        %v458 = vadd.f32 0.0, %v457
        %459 = vdwg.mxu0
        %460 = vmatprep.subr.mxu0 0.0
        %461 = vmatpush1.msra.mxu0 0.0
        %462 = vmatprep.subr.mxu0 0.0
        %463 = vmatpush1.msra.mxu0 0.0
        %464 = vmatprep.subr.mxu0 0.0
        %465 = vmatpush1.msra.mxu0 0.0
        %466 = vmatprep.subr.mxu0 0.0
        %467 = vmatpush1.msra.mxu0 0.0
        %468 = vmatprep.subr.mxu0 0.0
        %469 = vmatpush1.msra.mxu0 0.0
        %470 = vmatprep.subr.mxu0 0.0
        %471 = vmatpush1.msra.mxu0 0.0
        %472 = vmatprep.subr.mxu0 0.0
        %473 = vmatpush1.msra.mxu0 0.0
        %474 = vmatprep.subr.mxu0 0.0
        %475 = vmatpush1.msra.mxu0 0.0
        %476 = vmatprep.subr.mxu0 0.0
        %477 = vmatpush1.msra.mxu0 0.0
        %478 = vmatprep.subr.mxu0 0.0
        %479 = vmatpush1.msra.mxu0 0.0
        %480 = vmatprep.subr.mxu0 0.0
        %481 = vmatpush1.msra.mxu0 0.0
        %482 = vmatprep.subr.mxu0 0.0
        %483 = vmatpush1.msra.mxu0 0.0
        %484 = vmatprep.subr.mxu0 0.0
        %485 = vmatpush1.msra.mxu0 0.0
        %486 = vmatprep.subr.mxu0 0.0
        %487 = vmatpush1.msra.mxu0 0.0
        %488 = vmatprep.subr.mxu0 0.0
        %489 = vmatpush1.msra.mxu0 %v357
        %490 = vmatprep.subr.mxu0 0.0
        %491 = vmatpush1.msra.mxu0 %v354
        %492 = vmatprep.subr.mxu0 0.0
        %493 = vmatpush2.msra.mxu0 0.0
        %494 = vmatprep.subr.mxu0 0.0
        %495 = vmatpush2.msra.mxu0 0.0
        %496 = vmatprep.subr.mxu0 0.0
        %497 = vmatpush2.msra.mxu0 0.0
        %498 = vmatprep.subr.mxu0 0.0
        %499 = vmatpush2.msra.mxu0 0.0
        %500 = vmatprep.subr.mxu0 0.0
        %501 = vmatpush2.msra.mxu0 0.0
        %502 = vmatprep.subr.mxu0 0.0
        %503 = vmatpush2.msra.mxu0 0.0
        %504 = vmatprep.subr.mxu0 0.0
        %505 = vmatpush2.msra.mxu0 0.0
        %506 = vmatprep.subr.mxu0 0.0
        %507 = vmatpush2.msra.mxu0 0.0
        %508 = vmatprep.subr.mxu0 0.0
        %509 = vmatpush2.msra.mxu0 0.0
        %510 = vmatprep.subr.mxu0 0.0
        %511 = vmatpush2.msra.mxu0 0.0
        %512 = vmatprep.subr.mxu0 0.0
        %513 = vmatpush2.msra.mxu0 0.0
        %514 = vmatprep.subr.mxu0 0.0
        %515 = vmatpush2.msra.mxu0 0.0
        %516 = vmatprep.subr.mxu0 0.0
        %517 = vmatpush2.msra.mxu0 0.0
        %518 = vmatprep.subr.mxu0 0.0
        %519 = vmatpush2.msra.mxu0 0.0
        %520 = vmatprep.subr.mxu0 0.0
        %521 = vmatpush2.msra.mxu0 0.0
        %522 = vmatprep.subr.mxu0 0.0
        %523 = vmatpush2.msra.mxu0 0.0
        %524 = vmatprep.mubr.f32.mxu0 0.0
        %525 = vmatmul.mubr.f32.gmra.mxu0 %v360
        %v526 = vpop.f32.mrf.mxu0
        %v527 = vadd.f32 0.0, %v526
        %v528 = vpop.f32.mrf.mxu0
        %529 = vmatprep.mubr.f32.mxu0 0.0
        %530 = vmatmul.mubr.f32.gmra.mxu0 %v363
        %v531 = vpop.f32.mrf.mxu0
        %v532 = vadd.f32 0.0, %v531
        %v533 = vpop.f32.mrf.mxu0
        %534 = vmatprep.mubr.f32.mxu0 0.0
        %535 = vmatmul.mubr.f32.gmra.mxu0 %v366
        %v536 = vpop.f32.mrf.mxu0
        %v537 = vadd.f32 0.0, %v536
        %v538 = vpop.f32.mrf.mxu0
        %539 = vmatprep.mubr.f32.mxu0 0.0
        %540 = vmatmul.mubr.f32.gmra.mxu0 %v369
        %v541 = vpop.f32.mrf.mxu0
        %v542 = vadd.f32 0.0, %v541
        %v543 = vpop.f32.mrf.mxu0
        %544 = vdwg.mxu0
        %v545 = vld [vmem:[%s318] sm:$0xff]
        %v546 = vld [vmem:[%s318 + $0x8] sm:$0xff]
        %v547 = vld [vmem:[%s318 + $0x10] sm:$0xff]
        %v548 = vld [vmem:[%s318 + $0x18] sm:$0xff]
        %v549 = vcvt.s32.f32 %v545
        %v550 = vcvt.s32.f32 %v546
        %v551 = vcvt.s32.f32 %v547
        %v552 = vcvt.s32.f32 %v548
        %v553 = vmul.f32 %v549, 0.14285715
        %v554 = vmul.f32 %v550, 0.14285715
        %v555 = vmul.f32 %v551, 0.14285715
        %v556 = vmul.f32 %v552, 0.14285715
        %v557 = vmul.f32 %v553, %v553
        %v558 = vmul.f32 %v554, %v554
        %v559 = vmul.f32 %v555, %v555
        %v560 = vmul.f32 %v556, %v556
        %v561 = vadd.s32 %v327, 128
        %vm562 = vcmp.lt.s32.totalorder %v327, 128
        %vm563 = vcmp.lt.s32.totalorder %v561, 128
        %565 = vset.pattern.permute.xlu0 0
        %566 = vperm.xlu0 %565, %v557
        %v567 = vpop.permute.xlu0 %566
        %570 = vset.pattern.permute.xlu0 0
        %571 = vperm.xlu0 %570, %v558
        %v572 = vpop.permute.xlu0 %571
        %575 = vset.pattern.permute.xlu0 0
        %576 = vperm.xlu0 %575, %v559
        %v577 = vpop.permute.xlu0 %576
        %580 = vset.pattern.permute.xlu0 0
        %581 = vperm.xlu0 %580, %v560
        %v582 = vpop.permute.xlu0 %581
        %v584 = vsel %vm562, 1.0, %v567
        %v585 = vsel %vm563, 1.0, %v567
        %v586 = vsel %vm562, 1.0, %v572
        %v587 = vsel %vm563, 1.0, %v572
        %v588 = vsel %vm562, 1.0, %v577
        %v589 = vsel %vm563, 1.0, %v577
        %v590 = vsel %vm562, 1.0, %v582
        %v591 = vsel %vm563, 1.0, %v582
        %v592 = vmul.f32 %v438, %v584
        %v593 = vmul.f32 %v440, %v585
        %v594 = vmul.f32 %v444, %v586
        %v595 = vmul.f32 %v446, %v587
        %v596 = vmul.f32 %v450, %v588
        %v597 = vmul.f32 %v452, %v589
        %v598 = vmul.f32 %v456, %v590
        %v599 = vmul.f32 %v458, %v591
        %v600 = vld [vmem:[%s5] sm:$0xff]
        %v601 = vld [vmem:[%s5 + $0x8] sm:$0xff]
        %v602 = vld [vmem:[%s5 + $0x10] sm:$0xff]
        %v603 = vld [vmem:[%s5 + $0x18] sm:$0xff]
        %vm604 = vcmask 261120
        %v606 = vsel %vm604, %v600, 0
        %v609 = vsel %vm604, %v601, 0
        %v612 = vsel %vm604, %v602, 0
        %v615 = vsel %vm604, %v603, 0
        %617 = vmatprep.subr.mxu0 0.0
        %618 = vmatpush1.msra.mxu0 0.0
        %619 = vmatprep.subr.mxu0 0.0
        %620 = vmatpush1.msra.mxu0 0.0
        %621 = vmatprep.subr.mxu0 0.0
        %622 = vmatpush1.msra.mxu0 0.0
        %623 = vmatprep.subr.mxu0 0.0
        %624 = vmatpush1.msra.mxu0 0.0
        %625 = vmatprep.subr.mxu0 0.0
        %626 = vmatpush1.msra.mxu0 0.0
        %627 = vmatprep.subr.mxu0 0.0
        %628 = vmatpush1.msra.mxu0 0.0
        %629 = vmatprep.subr.mxu0 0.0
        %630 = vmatpush1.msra.mxu0 0.0
        %631 = vmatprep.subr.mxu0 0.0
        %632 = vmatpush1.msra.mxu0 0.0
        %633 = vmatprep.subr.mxu0 0.0
        %634 = vmatpush1.msra.mxu0 0.0
        %635 = vmatprep.subr.mxu0 0.0
        %636 = vmatpush1.msra.mxu0 0.0
        %637 = vmatprep.subr.mxu0 0.0
        %638 = vmatpush1.msra.mxu0 0.0
        %639 = vmatprep.subr.mxu0 0.0
        %640 = vmatpush1.msra.mxu0 0.0
        %641 = vmatprep.subr.mxu0 %v599
        %642 = vmatpush1.msra.mxu0 %v598
        %643 = vmatprep.subr.mxu0 %v597
        %644 = vmatpush1.msra.mxu0 %v596
        %645 = vmatprep.subr.mxu0 %v595
        %646 = vmatpush1.msra.mxu0 %v594
        %647 = vmatprep.subr.mxu0 %v593
        %648 = vmatpush1.msra.mxu0 %v592
        %649 = vmatprep.subr.mxu0 0.0
        %650 = vmatpush2.msra.mxu0 0.0
        %651 = vmatprep.subr.mxu0 0.0
        %652 = vmatpush2.msra.mxu0 0.0
        %653 = vmatprep.subr.mxu0 0.0
        %654 = vmatpush2.msra.mxu0 0.0
        %655 = vmatprep.subr.mxu0 0.0
        %656 = vmatpush2.msra.mxu0 0.0
        %657 = vmatprep.subr.mxu0 0.0
        %658 = vmatpush2.msra.mxu0 0.0
        %659 = vmatprep.subr.mxu0 0.0
        %660 = vmatpush2.msra.mxu0 0.0
        %661 = vmatprep.subr.mxu0 0.0
        %662 = vmatpush2.msra.mxu0 0.0
        %663 = vmatprep.subr.mxu0 0.0
        %664 = vmatpush2.msra.mxu0 0.0
        %665 = vmatprep.subr.mxu0 0.0
        %666 = vmatpush2.msra.mxu0 0.0
        %667 = vmatprep.subr.mxu0 0.0
        %668 = vmatpush2.msra.mxu0 0.0
        %669 = vmatprep.subr.mxu0 0.0
        %670 = vmatpush2.msra.mxu0 0.0
        %671 = vmatprep.subr.mxu0 0.0
        %672 = vmatpush2.msra.mxu0 0.0
        %673 = vmatprep.subr.mxu0 0.0
        %674 = vmatpush2.msra.mxu0 0.0
        %675 = vmatprep.subr.mxu0 0.0
        %676 = vmatpush2.msra.mxu0 0.0
        %677 = vmatprep.subr.mxu0 0.0
        %678 = vmatpush2.msra.mxu0 0.0
        %679 = vmatprep.subr.mxu0 0.0
        %680 = vmatpush2.msra.mxu0 0.0
        %681 = vmatprep.mubr.f32.mxu0 0.0
        %682 = vmatmul.mubr.f32.gmra.mxu0 %v606
        %v683 = vpop.f32.mrf.mxu0
        %v684 = vadd.f32 0.0, %v683
        %v685 = vpop.f32.mrf.mxu0
        %v686 = vadd.f32 0.0, %v685
        %687 = vmatprep.mubr.f32.mxu0 0.0
        %688 = vmatmul.mubr.f32.gmra.mxu0 %v609
        %v689 = vpop.f32.mrf.mxu0
        %v690 = vadd.f32 0.0, %v689
        %v691 = vpop.f32.mrf.mxu0
        %v692 = vadd.f32 0.0, %v691
        %693 = vmatprep.mubr.f32.mxu0 0.0
        %694 = vmatmul.mubr.f32.gmra.mxu0 %v612
        %v695 = vpop.f32.mrf.mxu0
        %v696 = vadd.f32 0.0, %v695
        %v697 = vpop.f32.mrf.mxu0
        %v698 = vadd.f32 0.0, %v697
        %699 = vmatprep.mubr.f32.mxu0 0.0
        %700 = vmatmul.mubr.f32.gmra.mxu0 %v615
        %v701 = vpop.f32.mrf.mxu0
        %v702 = vadd.f32 0.0, %v701
        %v703 = vpop.f32.mrf.mxu0
        %v704 = vadd.f32 0.0, %v703
        %705 = vdwg.mxu0
        %v706 = vsub.f32 %v686, %v593
        %v707 = vsub.f32 %v692, %v595
        %v708 = vsub.f32 %v698, %v597
        %v709 = vsub.f32 %v704, %v599
        %v710 = vadd.f32 %v684, %v706
        %v711 = vadd.f32 %v690, %v707
        %v712 = vadd.f32 %v696, %v708
        %v713 = vadd.f32 %v702, %v709
        %v714 = vsub.f32 %v710, %v438
        %v715 = vsub.f32 %v711, %v444
        %v716 = vsub.f32 %v712, %v450
        %v717 = vsub.f32 %v713, %v456
        %v718 = vadd.f32 %v710, %v527
        %v719 = vadd.f32 %v711, %v532
        %v720 = vadd.f32 %v712, %v537
        %v721 = vadd.f32 %v713, %v542
        %v722 = vld [vmem:[%s321] sm:$0x1]
        %v723 = vld [vmem:[%s4] sm:$0xff]
        %v724 = vld [vmem:[%s4 + $0x8] sm:$0xff]
        %v725 = vld [vmem:[%s4 + $0x10] sm:$0xff]
        %v726 = vld [vmem:[%s4 + $0x18] sm:$0xff]
        %v728 = vlaneseq
        %v729 = vshrl.u32 %v728, 7
        %v730 = vsub.s32 0, %v729
        %v731 = vrot.slane %v722, %v730
        %v733 = vadd.f32 %v731, %v723
        %v734 = vadd.f32 %v731, %v724
        %v735 = vadd.f32 %v731, %v725
        %v736 = vadd.f32 %v731, %v726
        %v737 = vadd.f32 %v714, %v733
        %v738 = vadd.f32 %v715, %v734
        %v739 = vadd.f32 %v716, %v735
        %v740 = vadd.f32 %v717, %v736
        %741 = vst.msk [vmem:[%s301] sm:$0xff] %vm604, %v737
        %742 = vst.msk [vmem:[%s301 + $0x8] sm:$0xff] %vm604, %v738
        %743 = vst.msk [vmem:[%s301 + $0x10] sm:$0xff] %vm604, %v739
        %744 = vst.msk [vmem:[%s301 + $0x18] sm:$0xff] %vm604, %v740
        %v745 = vadd.f32 %v718, %v733
        %v746 = vadd.f32 %v719, %v734
        %v747 = vadd.f32 %v720, %v735
        %v748 = vadd.f32 %v721, %v736
        %749 = vst.msk [vmem:[%s308] sm:$0xff] %vm604, %v745
        %750 = vst.msk [vmem:[%s308 + $0x8] sm:$0xff] %vm604, %v746
        %751 = vst.msk [vmem:[%s308 + $0x10] sm:$0xff] %vm604, %v747
        %752 = vst.msk [vmem:[%s308 + $0x18] sm:$0xff] %vm604, %v748
        %s753 = sand.u32 %s174, 1
        %s754 = scalar_lea.sflag [#allocation3], %s753
        %s755 = sand.u32 %s174, 1
        %s756 = smul.addr %s755, 32
        %s757 = scalar_lea.vmem [#allocation2], %s756
        %s758 = sand.u32 %s200, 1
        %s759 = scalar_lea.sflag [#allocation5], %s758
        %s760 = sand.u32 %s200, 1
        %s761 = smul.addr %s760, 32
        %s762 = scalar_lea.vmem [#allocation4], %s761
        // Predicated region
        $region45: #{tpu_custom_call.1} parent=43 // pred_check
          %p763 = pneg %p184
        $region46: #{tpu_custom_call.1} parent=43 // pred_check_branch
          %765 = sbr.rel (%p763) target = $region48
        $region47: #{tpu_custom_call.1} parent=43 // pred_region
          %s767 = ssub.s32 512, 512
          %768 = vsyncadd %s754, %s767
          %s769 = smul.addr %s25, 4
          %s770 = smul.addr %s769, 128
          %s771 = scalar_lea.hbm %s6, %s770
          %s772 = sshll.u32 %s757, 4
          %s773 = int_to_ptr.vmem [resolvable:$true] %s772
          %778 = dma.vmem_to_hbm [thread:$0]  %s773, 512, %s771, %s754, 128, 128, 8
        $region48: #{tpu_custom_call.1} parent=43 // pred_fallthru
          _
        // Predicated region
        $region49: #{tpu_custom_call.1} parent=43 // pred_check
          %p779 = pneg %p210
        $region50: #{tpu_custom_call.1} parent=43 // pred_check_branch
          %781 = sbr.rel (%p779) target = $region52
        $region51: #{tpu_custom_call.1} parent=43 // pred_region
          %s783 = ssub.s32 512, 512
          %784 = vsyncadd %s759, %s783
          %s785 = smul.addr %s25, 4
          %s786 = smul.addr %s785, 128
          %s787 = scalar_lea.hbm %s7, %s786
          %s788 = sshll.u32 %s762, 4
          %s789 = int_to_ptr.vmem [resolvable:$true] %s788
          %794 = dma.vmem_to_hbm [thread:$0]  %s789, 512, %s787, %s759, 128, 128, 8
        $region52: #{tpu_custom_call.1} parent=43 // pred_fallthru
          _
      $region44: #{tpu_custom_call.1} parent=5 // pred_fallthru
        _
      %p795 = scmp.le.s32.totalorder 2, %s20
      // Predicated region
      $region53: #{tpu_custom_call.1} parent=5 // pred_check
        %p796 = pneg %p795
      $region54: #{tpu_custom_call.1} parent=5 // pred_check_branch
        %798 = sbr.rel (%p796) target = $region56
      $region55: #{tpu_custom_call.1} parent=5 // pred_region
        %s799 = ssub.s32 %s20, 2
        // Predicated region
        $region57: #{tpu_custom_call.1} parent=55 // pred_check
          %p800 = pneg %p190
        $region58: #{tpu_custom_call.1} parent=55 // pred_check_branch
          %802 = sbr.rel (%p800) target = $region60
        $region59: #{tpu_custom_call.1} parent=55 // pred_region
          %s803 = sand.u32 %s175, 1
          %s804 = scalar_lea.sflag [#allocation3], %s803
          %s805 = sand.u32 %s175, 1
          %s806 = smul.addr %s805, 32
          %s807 = scalar_lea.vmem [#allocation2], %s806
          %808 = dma.done %s804, 512
        $region60: #{tpu_custom_call.1} parent=55 // pred_fallthru
          _
        // Predicated region
        $region61: #{tpu_custom_call.1} parent=55 // pred_check
          %p809 = pneg %p216
        $region62: #{tpu_custom_call.1} parent=55 // pred_check_branch
          %811 = sbr.rel (%p809) target = $region64
        $region63: #{tpu_custom_call.1} parent=55 // pred_region
          %s812 = sand.u32 %s201, 1
          %s813 = scalar_lea.sflag [#allocation5], %s812
          %s814 = sand.u32 %s201, 1
          %s815 = smul.addr %s814, 32
          %s816 = scalar_lea.vmem [#allocation4], %s815
          %817 = dma.done %s813, 512
        $region64: #{tpu_custom_call.1} parent=55 // pred_fallthru
          _
      $region56: #{tpu_custom_call.1} parent=5 // pred_fallthru
        _
    $region6: #{tpu_custom_call.1} parent=1 // loop_footer
      %s24 = sadd.s32 1, %s20
    $region7: #{tpu_custom_call.1} parent=1 // loop_footer_branch
      %19 = sbr.rel target = $region3
    $region8: #{tpu_custom_call.1} parent=1 // loop_exit
      _
    %818 = vsyncpa [#allocation3], 1
    %s819 = scalar_lea.sflag [#allocation3], 1
    %820 = vsyncpa %s819, 1
    %821 = vsyncpa [#allocation5], 1
    %s822 = scalar_lea.sflag [#allocation5], 1
    %823 = vsyncpa %s822, 1

</llo_original>
